<compile_context>
chip_gen: v6e
topology: v6e:2x2x1
jax: 0.10.0
libtpu: 0.0.40
codegen_flags: <defaults>
</compile_context>

<pallas_src>
import functools

import jax
import jax.numpy as jnp
import numpy as np
from jax import lax
from jax.experimental import pallas as pl
from jax.experimental.pallas import tpu as pltpu


def _ceil_to(v, m):
    return ((v + m - 1) // m) * m


def _pick_row_tile(n, dw, target_bytes=2 * 1024 * 1024):
    rt = (target_bytes // (dw * 4)) // 128 * 128
    rt = max(128, min(2048, rt))
    rt = min(rt, _ceil_to(n, 128))
    return int(rt)


# ----------------------------------------------------------------------------
# Pass 1: streaming per-group statistics (single matmul per tile).
#   x_ref   : (row_tile, Dw) f32, Dw = Dp + 128; lane Dp holds 1.0 (count),
#             lane Dp+1 holds |x_row|^2; padding rows are all-zero.
#   g_ref   : (1, row_tile) int32 lane-dense group codes.
#   out_ref : (1, Gp, Dw) f32 partial accumulator for this parallel shard.
# ----------------------------------------------------------------------------
def _stats_kernel(x_ref, g_ref, out_ref, *, Gp):
    f32 = jnp.float32
    tn = x_ref.shape[0]

    @pl.when(pl.program_id(1) == 0)
    def _init():
        out_ref[...] = jnp.zeros_like(out_ref)

    g = g_ref[...]                                           # (1, tn) int32
    row = lax.broadcasted_iota(jnp.int32, (Gp, tn), 0)       # group id on sublanes
    ohT = (row == g).astype(f32)                             # (Gp, tn) pre-transposed one-hot
    out_ref[...] += jnp.dot(ohT, x_ref[...],
                            preferred_element_type=f32)[None]   # (1, Gp, Dw)


# ----------------------------------------------------------------------------
# Pass 2: per-row apply  out = alpha_g * x_shifted + beta_g
#   (beta_g already folds (1-alpha)*mean and the centering shift; the test
#    bucket carries alpha=1, beta=shift so it is the identity on original x).
# ----------------------------------------------------------------------------
def _apply_kernel(x_ref, g_ref, a_ref, b_ref, o_ref, *, Gp):
    f32 = jnp.float32
    tn = x_ref.shape[0]
    g = g_ref[...]                                           # (tn, 1) int32
    col = lax.broadcasted_iota(jnp.int32, (tn, Gp), 1)
    oh = (col == g).astype(f32)                              # (tn, Gp)
    a = jnp.dot(oh, a_ref[...], preferred_element_type=f32)  # (tn, 128); alpha in lane 0
    b = jnp.dot(oh, b_ref[...], preferred_element_type=f32)  # (tn, Dp)
    o_ref[...] = (a[:, 0:1] * x_ref[...] + b).astype(o_ref.dtype)


# ----------------------------------------------------------------------------
# Tiny combine + finalize in plain JAX (O(Gp*Dp) work).
# ----------------------------------------------------------------------------
def _finalize_coeffs(stats, shift_pad, *, T, L, split, Dp, Gp):
    f32 = jnp.float32
    G = T * L
    gsum = stats[:, :Dp]                        # (Gp, Dp) shifted group sums
    cnt = stats[:, Dp]                          # (Gp,)
    ssq = stats[:, Dp + 1]                      # (Gp,)

    grp_sum = gsum[:G].reshape(T, L, Dp)
    grp_cnt = cnt[:G].reshape(T, L)
    grp_ssq = ssq[:G].reshape(T, L)

    mean_g = grp_sum / jnp.maximum(1.0, grp_cnt)[..., None]          # shifted group means
    time_sum = grp_sum.sum(1)
    time_cnt = grp_cnt.sum(1)
    time_ssq = grp_ssq.sum(1)
    time_mean = time_sum / jnp.maximum(1.0, time_cnt)[:, None]

    s_t = (grp_cnt * jnp.sum(mean_g * mean_g, -1)).sum(1)            # sum_l cnt*|mean|^2
    rsq = time_ssq - s_t                                             # sum |x - mean_g|^2 per time
    msq = s_t - time_cnt * jnp.sum(time_mean * time_mean, -1)        # sum cnt*|mean_g - tmean|^2

    t_cnt = cnt[G]
    t_mean = gsum[G] / jnp.maximum(1.0, t_cnt)
    test_var = (ssq[G] - t_cnt * jnp.sum(t_mean * t_mean)) / jnp.maximum(1.0, t_cnt - 1.0)

    denom = jnp.maximum(1.0, time_cnt - 1.0)
    alpha_sq = (test_var - msq / denom) / jnp.maximum(1e-6, rsq / denom)
    alpha_t = jnp.where(alpha_sq > 0.0, jnp.sqrt(jnp.maximum(alpha_sq, 0.0)), 0.0)
    alpha_t = jnp.where(jnp.arange(T) < split, alpha_t, 1.0)         # non-train times unused

    alpha_all = jnp.concatenate([jnp.repeat(alpha_t, L),
                                 jnp.ones((1,), f32)])               # (G+1,), test bucket -> 1
    mean_all = jnp.concatenate([mean_g.reshape(G, Dp),
                                jnp.zeros((1, Dp), f32)], axis=0)    # (G+1, Dp)
    # out = alpha*(x - shift) + beta  with  beta = (1-alpha)*mean_shifted + shift
    beta_all = (1.0 - alpha_all)[:, None] * mean_all + shift_pad[None, :]

    alpha_tab = jnp.zeros((Gp, 128), f32).at[:G + 1, 0].set(alpha_all)
    beta_tab = jnp.zeros((Gp, Dp), f32).at[:G + 1, :].set(beta_all)
    return alpha_tab, beta_tab


@functools.partial(jax.jit, static_argnames=("num_time", "num_label", "split"))
def jj_norm_pallas(x, labels, times, *, num_time, num_label, split):
    f32 = jnp.float32
    x = jnp.asarray(x, f32)
    n, d = x.shape
    T, L = int(num_time), int(num_label)
    split = int(split)
    G = T * L                                   # flat (time, label) train groups
    Gp = _ceil_to(G + 1, 128)                   # + 1 test bucket, lane-padded
    Dp = _ceil_to(d, 128)                       # lane-dense feature width
    Dw = Dp + 128                               # + aux lanes (count, |x|^2)

    row_tile = _pick_row_tile(n, Dw)
    Np = _ceil_to(n, row_tile)
    nt = Np // row_tile
    S = 2 if (nt % 2 == 0 and nt >= 2) else 1   # shard pass 1 across v7x's 2 TCs
    ni = nt // S
    vmem_limit = 48 * 1024 * 1024

    # ---- wrapper prep (fuses: cast, coarse centering, pad, aux lanes) ----
    shift = jnp.mean(x[:min(n, 4096)], axis=0)                # coarse per-feature shift
    xs = x - shift
    rowsq = jnp.sum(xs * xs, axis=1)

    x_prep = jnp.zeros((Np, Dw), f32)
    x_prep = x_prep.at[:n, :d].set(xs)
    x_prep = x_prep.at[:n, Dp].set(1.0)
    x_prep = x_prep.at[:n, Dp + 1].set(rowsq)

    times_i = jnp.asarray(times, jnp.int32)
    labels_i = jnp.asarray(labels, jnp.int32)
    gcode = jnp.where(times_i < split, times_i * L + labels_i, G).astype(jnp.int32)
    # Padding rows carry gcode == G but contribute exactly zero (their x rows,
    # including the count lane, are all zero).
    gcode_lane = jnp.full((1, Np), G, jnp.int32).at[0, :n].set(gcode)   # pass 1 (lane-dense)
    gcode_sub = jnp.full((Np, 1), G, jnp.int32).at[:n, 0].set(gcode)    # pass 2 (per-row)

    shift_pad = jnp.zeros((Dp,), f32).at[:d].set(shift)

    # ---- pass 1: per-shard partial group stats ----
    partials = pl.pallas_call(
        functools.partial(_stats_kernel, Gp=Gp),
        grid=(S, ni),
        in_specs=[pl.BlockSpec((row_tile, Dw), lambda s, i: (s * ni + i, 0)),
                  pl.BlockSpec((1, row_tile), lambda s, i: (0, s * ni + i))],
        out_specs=pl.BlockSpec((1, Gp, Dw), lambda s, i: (s, 0, 0)),
        out_shape=jax.ShapeDtypeStruct((S, Gp, Dw), f32),
        compiler_params=pltpu.CompilerParams(
            dimension_semantics=("parallel", "arbitrary"),
            vmem_limit_bytes=vmem_limit),
    )(x_prep, gcode_lane)

    # ---- tiny combine + finalize in plain JAX ----
    stats = partials.sum(axis=0)                                        # (Gp, Dw)
    alpha_tab, beta_tab = _finalize_coeffs(stats, shift_pad,
                                           T=T, L=L, split=split, Dp=Dp, Gp=Gp)

    # ---- pass 2: apply blend per row tile ----
    out_pad = pl.pallas_call(
        functools.partial(_apply_kernel, Gp=Gp),
        grid=(nt,),
        in_specs=[pl.BlockSpec((row_tile, Dp), lambda i: (i, 0)),   # first Dp lanes of x_prep
                  pl.BlockSpec((row_tile, 1), lambda i: (i, 0)),
                  pl.BlockSpec((Gp, 128), lambda i: (0, 0)),
                  pl.BlockSpec((Gp, Dp), lambda i: (0, 0))],
        out_specs=pl.BlockSpec((row_tile, Dp), lambda i: (i, 0)),
        out_shape=jax.ShapeDtypeStruct((Np, Dp), f32),
        compiler_params=pltpu.CompilerParams(
            dimension_semantics=("parallel",),
            vmem_limit_bytes=vmem_limit),
    )(x_prep, gcode_sub, alpha_tab, beta_tab)

    if Np == n and Dp == d:
        return out_pad
    return out_pad[:n, :d]


# ----------------------------------------------------------------------------
# Reference (direct numpy port of the PyTorch forward, loop semantics)
# ----------------------------------------------------------------------------
def _reference_jj_norm(x, labels, times, num_time, num_label, split):
    x = np.asarray(x, np.float32)
    n, d = x.shape
    clone = x.copy()
    train_idx = np.nonzero(times < split)[0]
    test_idx = np.nonzero(times >= split)[0]
    train_mean = np.zeros((num_time, num_label, d), np.float32)
    train_cnt = np.zeros((num_time, num_label), np.float32)
    train_time_mean = np.zeros((num_time, d), np.float32)
    train_time_cnt = np.zeros(num_time, np.float32)
    test_cnt = 0.0
    test_mean = np.zeros(d, np.float32)
    for u in test_idx:
        test_cnt += 1.0
        test_mean += x[u]
    for u in train_idx:
        t, l = int(times[u]), int(labels[u])
        train_time_cnt[t] += 1.0
        train_cnt[t, l] += 1.0
        train_mean[t, l] += x[u]
    for t in range(num_time):
        for l in range(num_label):
            train_time_mean[t] += train_mean[t, l]
            train_mean[t, l] = train_mean[t, l] / max(1.0, train_cnt[t, l])
        train_time_mean[t] /= max(1.0, train_time_cnt[t])
    test_mean /= max(1.0, test_cnt)
    test_var = 0.0
    rsq = np.zeros(num_time, np.float32)
    msq = np.zeros(num_time, np.float32)
    for u in test_idx:
        test_var += float(np.sum((x[u] - test_mean) ** 2))
    for u in train_idx:
        t, l = int(times[u]), int(labels[u])
        msq[t] += np.sum((train_mean[t, l] - train_time_mean[t]) ** 2)
        rsq[t] += np.sum((x[u] - train_mean[t, l]) ** 2)
    test_var /= max(1.0, test_cnt - 1.0)
    for t in range(split):
        msq[t] /= max(1.0, train_time_cnt[t] - 1.0)
        rsq[t] /= max(1.0, train_time_cnt[t] - 1.0)
    alpha = np.ones(split, np.float32)
    for t in range(split):
        a2 = (test_var - msq[t]) / max(1e-06, rsq[t])
        alpha[t] = np.sqrt(a2) if a2 > 0 else 0.0
    for u in train_idx:
        t, l = int(times[u]), int(labels[u])
        clone[u] = alpha[t] * x[u] + (1.0 - alpha[t]) * train_mean[t, l]
    return clone


if __name__ == "__main__":
    key = jax.random.PRNGKey(0)
    kx, kl = jax.random.split(key)

    N, D = 24, 32
    num_time, num_label, split = 4, 3, 2

    x = jax.random.normal(kx, (N, D), dtype=jnp.float32)
    times = jnp.arange(N, dtype=jnp.int32) % num_time       # train (t<2) & test (t>=2)
    labels = jax.random.randint(kl, (N,), 0, num_label, dtype=jnp.int32)

    out = jj_norm_pallas(x, labels, times,
                         num_time=num_time, num_label=num_label, split=split)
    out = jax.block_until_ready(out)

    ref = _reference_jj_norm(np.asarray(x), np.asarray(labels), np.asarray(times),
                             num_time, num_label, split)
    np.testing.assert_allclose(np.asarray(out), ref, rtol=1e-4, atol=1e-4)
    print("KERNEL_OK")
</pallas_src>

<mosaic_0001>
module attributes {stable_mosaic.version = 11 : i64} {
  func.func @_stats_kernel(%arg0: i32, %arg1: i32, %arg2: memref<128x256xf32, #tpu.memory_space<vmem>>, %arg3: memref<1x128xi32, #tpu.memory_space<vmem>>, %arg4: memref<1x128x256xf32, #tpu.memory_space<vmem>>) attributes {dimension_semantics = [#tpu.dimension_semantics<parallel>, #tpu.dimension_semantics<arbitrary>], iteration_bounds = array<i64: 1, 1>, scalar_prefetch = 0 : i64, scratch_operands = 0 : i64, tpu.core_type = #tpu.core_type<tc>, window_params = [{transform_indices = @transform_0, window_bounds = array<i64: 128, 256>}, {transform_indices = @transform_1, window_bounds = array<i64: 1, 128>}, {transform_indices = @transform_2, window_bounds = array<i64: 1, 128, 256>}]} {
    %c0_i32 = arith.constant 0 : i32
    %0 = arith.cmpi eq, %arg1, %c0_i32 : i32
    %1 = arith.extui %0 : i1 to i32
    %c0_i32_0 = arith.constant 0 : i32
    %2 = arith.cmpi ne, %1, %c0_i32_0 : i32
    scf.if %2 {
      %cst_10 = arith.constant 0.000000e+00 : f32
      %15 = vector.broadcast %cst_10 : f32 to vector<1x128x256xf32>
      %c0_11 = arith.constant 0 : index
      %c0_12 = arith.constant 0 : index
      %c0_13 = arith.constant 0 : index
      %16 = vector.load %arg4[%c0_11, %c0_12, %c0_13] : memref<1x128x256xf32, #tpu.memory_space<vmem>>, vector<1x128x256xf32>
      tpu.vector_store %arg4[%c0_11, %c0_12, %c0_13], %15 {strides = array<i32>} : memref<1x128x256xf32, #tpu.memory_space<vmem>>, vector<1x128x256xf32>,
    } else {
    }
    %c0 = arith.constant 0 : index
    %c0_1 = arith.constant 0 : index
    %3 = vector.load %arg3[%c0, %c0_1] : memref<1x128xi32, #tpu.memory_space<vmem>>, vector<1x128xi32>
    %4 = tpu.iota {dimensions = array<i32: 0>} : vector<128x128xi32>
    %5 = vector.broadcast %3 : vector<1x128xi32> to vector<128x128xi32>
    %6 = arith.cmpi eq, %4, %5 : vector<128x128xi32>
    %7 = arith.extui %6 : vector<128x128xi1> to vector<128x128xi32>
    %8 = arith.sitofp %7 : vector<128x128xi32> to vector<128x128xf32>
    %c0_2 = arith.constant 0 : index
    %c0_3 = arith.constant 0 : index
    %c0_4 = arith.constant 0 : index
    %9 = vector.load %arg4[%c0_2, %c0_3, %c0_4] : memref<1x128x256xf32, #tpu.memory_space<vmem>>, vector<1x128x256xf32>
    %c0_5 = arith.constant 0 : index
    %c0_6 = arith.constant 0 : index
    %10 = vector.load %arg2[%c0_5, %c0_6] : memref<128x256xf32, #tpu.memory_space<vmem>>, vector<128x256xf32>
    %cst = arith.constant dense<0.000000e+00> : vector<128x256xf32>
    %11 = tpu.matmul %8, %10, %cst {dimension_numbers = #tpu.dot_dimension_numbers<[1], [0], [0], [1], [0, 0, 1, 1], [], []>} : vector<128x128xf32>, vector<128x256xf32>, vector<128x256xf32> -> vector<128x256xf32>
    %12 = vector.shape_cast %11 : vector<128x256xf32> to vector<1x128x256xf32>
    %13 = arith.addf %9, %12 : vector<1x128x256xf32>
    %c0_7 = arith.constant 0 : index
    %c0_8 = arith.constant 0 : index
    %c0_9 = arith.constant 0 : index
    %14 = vector.load %arg4[%c0_7, %c0_8, %c0_9] : memref<1x128x256xf32, #tpu.memory_space<vmem>>, vector<1x128x256xf32>
    tpu.vector_store %arg4[%c0_7, %c0_8, %c0_9], %13 {strides = array<i32>} : memref<1x128x256xf32, #tpu.memory_space<vmem>>, vector<1x128x256xf32>,
    return
  }
  func.func @transform_0(%arg0: i32, %arg1: i32) -> (i32, i32) {
    %c1_i32 = arith.constant 1 : i32
    %0 = arith.muli %arg0, %c1_i32 : i32
    %1 = arith.addi %0, %arg1 : i32
    %c0_i32 = arith.constant 0 : i32
    %c0_i32_0 = arith.constant 0 : i32
    return %1, %c0_i32 : i32, i32
  }
  func.func @transform_1(%arg0: i32, %arg1: i32) -> (i32, i32) {
    %c1_i32 = arith.constant 1 : i32
    %0 = arith.muli %arg0, %c1_i32 : i32
    %1 = arith.addi %0, %arg1 : i32
    %c0_i32 = arith.constant 0 : i32
    %c0_i32_0 = arith.constant 0 : i32
    return %c0_i32, %1 : i32, i32
  }
  func.func @transform_2(%arg0: i32, %arg1: i32) -> (i32, i32, i32) {
    %c0_i32 = arith.constant 0 : i32
    %c0_i32_0 = arith.constant 0 : i32
    %c0_i32_1 = arith.constant 0 : i32
    return %arg0, %c0_i32, %c0_i32_0 : i32, i32, i32
  }
}

module attributes {stable_mosaic.version = 11 : i64} {
  func.func @_apply_kernel(%arg0: i32, %arg1: memref<128x128xf32, #tpu.memory_space<vmem>>, %arg2: memref<128x1xi32, #tpu.memory_space<vmem>>, %arg3: memref<128x128xf32, #tpu.memory_space<vmem>>, %arg4: memref<128x128xf32, #tpu.memory_space<vmem>>, %arg5: memref<128x128xf32, #tpu.memory_space<vmem>>) attributes {dimension_semantics = [#tpu.dimension_semantics<parallel>], iteration_bounds = array<i64: 1>, scalar_prefetch = 0 : i64, scratch_operands = 0 : i64, tpu.core_type = #tpu.core_type<tc>, window_params = [{transform_indices = @transform_0, window_bounds = array<i64: 128, 128>}, {transform_indices = @transform_1, window_bounds = array<i64: 128, 1>}, {pipeline_mode = #tpu.pipeline_mode<synchronous>, transform_indices = @transform_2, window_bounds = array<i64: 128, 128>}, {pipeline_mode = #tpu.pipeline_mode<synchronous>, transform_indices = @transform_3, window_bounds = array<i64: 128, 128>}, {transform_indices = @transform_4, window_bounds = array<i64: 128, 128>}]} {
    %c0 = arith.constant 0 : index
    %c0_0 = arith.constant 0 : index
    %0 = vector.load %arg2[%c0, %c0_0] : memref<128x1xi32, #tpu.memory_space<vmem>>, vector<128x1xi32>
    %1 = tpu.iota {dimensions = array<i32: 1>} : vector<128x128xi32>
    %2 = vector.broadcast %0 : vector<128x1xi32> to vector<128x128xi32>
    %3 = arith.cmpi eq, %1, %2 : vector<128x128xi32>
    %4 = arith.extui %3 : vector<128x128xi1> to vector<128x128xi32>
    %5 = arith.sitofp %4 : vector<128x128xi32> to vector<128x128xf32>
    %c0_1 = arith.constant 0 : index
    %c0_2 = arith.constant 0 : index
    %6 = vector.load %arg3[%c0_1, %c0_2] : memref<128x128xf32, #tpu.memory_space<vmem>>, vector<128x128xf32>
    %cst = arith.constant dense<0.000000e+00> : vector<128x128xf32>
    %7 = tpu.matmul %5, %6, %cst {dimension_numbers = #tpu.dot_dimension_numbers<[1], [0], [0], [1], [0, 0, 1, 1], [], []>} : vector<128x128xf32>, vector<128x128xf32>, vector<128x128xf32> -> vector<128x128xf32>
    %c0_3 = arith.constant 0 : index
    %c0_4 = arith.constant 0 : index
    %8 = vector.load %arg4[%c0_3, %c0_4] : memref<128x128xf32, #tpu.memory_space<vmem>>, vector<128x128xf32>
    %cst_5 = arith.constant dense<0.000000e+00> : vector<128x128xf32>
    %9 = tpu.matmul %5, %8, %cst_5 {dimension_numbers = #tpu.dot_dimension_numbers<[1], [0], [0], [1], [0, 0, 1, 1], [], []>} : vector<128x128xf32>, vector<128x128xf32>, vector<128x128xf32> -> vector<128x128xf32>
    %10 = vector.extract_strided_slice %7 {offsets = [0, 0], sizes = [128, 1], strides = [1, 1]} : vector<128x128xf32> to vector<128x1xf32>
    %c0_6 = arith.constant 0 : index
    %c0_7 = arith.constant 0 : index
    %11 = vector.load %arg1[%c0_6, %c0_7] : memref<128x128xf32, #tpu.memory_space<vmem>>, vector<128x128xf32>
    %12 = vector.broadcast %10 : vector<128x1xf32> to vector<128x128xf32>
    %13 = arith.mulf %12, %11 : vector<128x128xf32>
    %14 = arith.addf %13, %9 : vector<128x128xf32>
    %c0_8 = arith.constant 0 : index
    %c0_9 = arith.constant 0 : index
    %15 = vector.load %arg5[%c0_8, %c0_9] : memref<128x128xf32, #tpu.memory_space<vmem>>, vector<128x128xf32>
    tpu.vector_store %arg5[%c0_8, %c0_9], %14 {strides = array<i32>} : memref<128x128xf32, #tpu.memory_space<vmem>>, vector<128x128xf32>,
    return
  }
  func.func @transform_0(%arg0: i32) -> (i32, i32) {
    %c0_i32 = arith.constant 0 : i32
    %c0_i32_0 = arith.constant 0 : i32
    return %arg0, %c0_i32 : i32, i32
  }
  func.func @transform_1(%arg0: i32) -> (i32, i32) {
    %c0_i32 = arith.constant 0 : i32
    %c0_i32_0 = arith.constant 0 : i32
    return %arg0, %c0_i32 : i32, i32
  }
  func.func @transform_2(%arg0: i32) -> (i32, i32) {
    %c0_i32 = arith.constant 0 : i32
    %c0_i32_0 = arith.constant 0 : i32
    %c0_i32_1 = arith.constant 0 : i32
    return %c0_i32, %c0_i32_0 : i32, i32
  }
  func.func @transform_3(%arg0: i32) -> (i32, i32) {
    %c0_i32 = arith.constant 0 : i32
    %c0_i32_0 = arith.constant 0 : i32
    %c0_i32_1 = arith.constant 0 : i32
    return %c0_i32, %c0_i32_0 : i32, i32
  }
  func.func @transform_4(%arg0: i32) -> (i32, i32) {
    %c0_i32 = arith.constant 0 : i32
    %c0_i32_0 = arith.constant 0 : i32
    return %arg0, %c0_i32 : i32, i32
  }
}

</mosaic_0001>

<llo_original>
// kernel: jj_norm_pallas.2
$region0: #{jj_norm_pallas.2}
  #allocation0 [shape = 'u32[]', space=smem, size = 0x4, offset = 0x4, fixed_abs, tag = 'smem constant byte address 0x4 - core index']
  #allocation1 [shape = 'u32[144,128]{1,0:T(1,128)}', space=vmem, size = 0x12000, scoped, tag = 'internal scratch']
  %s0 = inlined_call_operand.vmem [shape: f32[128,256], index: 0, kind: input, shape index: {}]
  %s1 = inlined_call_operand.vmem [shape: s32[1,128], index: 1, kind: input, shape index: {}]
  %s2 = inlined_call_operand.vmem [shape: f32[1,128,256], index: 2, kind: output, shape index: {}]
  %s3 = sld [smem:[#allocation0]]
  $region22: #{jj_norm_pallas.2} parent=0
    _
  %s5 = ssub.s32 1, %s3
  %s6 = scalar_select 0, %s5, %s3
  // Predicated region
  $region2: #{jj_norm_pallas.2} parent=0 // pred_check
    _
  $region3: #{jj_norm_pallas.2} parent=0 // pred_check_branch
    %8 = sbr.rel (0) target = $region5
  $region4: #{jj_norm_pallas.2} parent=0 // pred_region
    %s9 = sadd.s32 0, 0
    %s10 = smul.u32 16, %s9
    %p11 = scmp.lt.s32.totalorder %s10, 15
    %s12 = scalar_select %p11, %s10, 15
    %s13 = smul.addr %s12, 2
    %s14 = smul.addr %s13, 8
    %s15 = scalar_lea.vmem %s0, %s14
    %s16 = sadd.s32 0, 0
    %s17 = smul.u32 16, %s16
  $region5: #{jj_norm_pallas.2} parent=0 // pred_fallthru
    _
  // Predicated region
  $region6: #{jj_norm_pallas.2} parent=0 // pred_check
    _
  $region7: #{jj_norm_pallas.2} parent=0 // pred_check_branch
    %19 = sbr.rel (0) target = $region9
  $region8: #{jj_norm_pallas.2} parent=0 // pred_region
    %s20 = sadd.s32 0, 0
    %p21 = scmp.lt.s32.totalorder %s20, 0
    %s22 = scalar_select %p21, %s20, 0
    %s23 = scalar_lea.vmem %s1, %s22
    %s24 = sadd.s32 0, 0
  $region9: #{jj_norm_pallas.2} parent=0 // pred_fallthru
    _
  %s25 = sadd.s32 0, 0
  %s26 = smul.u32 16, %s25
  %p27 = scmp.lt.s32.totalorder %s26, 15
  %s28 = scalar_select %p27, %s26, 15
  %s29 = smul.addr %s28, 2
  %s30 = smul.addr %s29, 8
  %s31 = scalar_lea.vmem %s0, %s30
  %s32 = sadd.s32 0, 0
  %p33 = scmp.lt.s32.totalorder %s32, 0
  %s34 = scalar_select %p33, %s32, 0
  %s35 = scalar_lea.vmem %s1, %s34
  %s36 = sadd.s32 0, 0
  %s37 = smul.u32 16, %s36
  %p38 = scmp.lt.s32.totalorder %s37, 15
  %s39 = scalar_select %p38, %s37, 15
  %s40 = smul.addr %s39, 2
  %s41 = smul.addr %s40, 8
  %s42 = scalar_lea.vmem %s0, %s41
  %s43 = sadd.s32 0, 0
  %s44 = smul.u32 16, %s43
  %s45 = sadd.s32 0, 0
  %p46 = scmp.lt.s32.totalorder %s45, 0
  %s47 = scalar_select %p46, %s45, 0
  %s48 = scalar_lea.vmem %s1, %s47
  %s49 = sadd.s32 0, 0
  %p50 = scmp.eq.s32.totalorder 0, 0
  // Predicated region
  $region10: #{jj_norm_pallas.2} parent=0 // pred_check
    %p51 = pneg %p50
  $region11: #{jj_norm_pallas.2} parent=0 // pred_check_branch
    %53 = sbr.rel (%p51) target = $region13
  $region12: #{jj_norm_pallas.2} parent=0 // pred_region
    %54 = vst [vmem:[%s2] sm:$0xff] 0.0
    %55 = vst [vmem:[%s2 + $0x8] sm:$0xff] 0.0
    %56 = vst [vmem:[%s2 + $0x10] sm:$0xff] 0.0
    %57 = vst [vmem:[%s2 + $0x18] sm:$0xff] 0.0
    %58 = vst [vmem:[%s2 + $0x20] sm:$0xff] 0.0
    %59 = vst [vmem:[%s2 + $0x28] sm:$0xff] 0.0
    %60 = vst [vmem:[%s2 + $0x30] sm:$0xff] 0.0
    %61 = vst [vmem:[%s2 + $0x38] sm:$0xff] 0.0
    %62 = vst [vmem:[%s2 + $0x40] sm:$0xff] 0.0
    %63 = vst [vmem:[%s2 + $0x48] sm:$0xff] 0.0
    %64 = vst [vmem:[%s2 + $0x50] sm:$0xff] 0.0
    %65 = vst [vmem:[%s2 + $0x58] sm:$0xff] 0.0
    %66 = vst [vmem:[%s2 + $0x60] sm:$0xff] 0.0
    %67 = vst [vmem:[%s2 + $0x68] sm:$0xff] 0.0
    %68 = vst [vmem:[%s2 + $0x70] sm:$0xff] 0.0
    %69 = vst [vmem:[%s2 + $0x78] sm:$0xff] 0.0
    %70 = vst [vmem:[%s2 + $0x80] sm:$0xff] 0.0
    %71 = vst [vmem:[%s2 + $0x88] sm:$0xff] 0.0
    %72 = vst [vmem:[%s2 + $0x90] sm:$0xff] 0.0
    %73 = vst [vmem:[%s2 + $0x98] sm:$0xff] 0.0
    %74 = vst [vmem:[%s2 + $0xa0] sm:$0xff] 0.0
    %75 = vst [vmem:[%s2 + $0xa8] sm:$0xff] 0.0
    %76 = vst [vmem:[%s2 + $0xb0] sm:$0xff] 0.0
    %77 = vst [vmem:[%s2 + $0xb8] sm:$0xff] 0.0
    %78 = vst [vmem:[%s2 + $0xc0] sm:$0xff] 0.0
    %79 = vst [vmem:[%s2 + $0xc8] sm:$0xff] 0.0
    %80 = vst [vmem:[%s2 + $0xd0] sm:$0xff] 0.0
    %81 = vst [vmem:[%s2 + $0xd8] sm:$0xff] 0.0
    %82 = vst [vmem:[%s2 + $0xe0] sm:$0xff] 0.0
    %83 = vst [vmem:[%s2 + $0xe8] sm:$0xff] 0.0
    %84 = vst [vmem:[%s2 + $0xf0] sm:$0xff] 0.0
    %85 = vst [vmem:[%s2 + $0xf8] sm:$0xff] 0.0
  $region13: #{jj_norm_pallas.2} parent=0 // pred_fallthru
    _
  %v86 = vld [vmem:[%s48] sm:$0x1]
  %v87 = vlaneseq
  %v88 = vshrl.u32 %v87, 7
  %v89 = vadd.s32 %v88, 8
  %v90 = vadd.s32 %v88, 16
  %v91 = vadd.s32 %v88, 24
  %v92 = vadd.s32 %v88, 32
  %v93 = vadd.s32 %v88, 40
  %v94 = vadd.s32 %v88, 48
  %v95 = vadd.s32 %v88, 56
  %v96 = vadd.s32 %v88, 64
  %v97 = vadd.s32 %v88, 72
  %v98 = vadd.s32 %v88, 80
  %v99 = vadd.s32 %v88, 88
  %v100 = vadd.s32 %v88, 96
  %v101 = vadd.s32 %v88, 104
  %v102 = vadd.s32 %v88, 112
  %v103 = vadd.s32 %v88, 120
  %v104 = vlaneseq
  %v105 = vshrl.u32 %v104, 7
  %v106 = vsub.s32 0, %v105
  %v107 = vrot.slane %v86, %v106
  %vm108 = vcmp.eq.s32.totalorder %v88, %v107
  %vm109 = vcmp.eq.s32.totalorder %v89, %v107
  %vm110 = vcmp.eq.s32.totalorder %v90, %v107
  %vm111 = vcmp.eq.s32.totalorder %v91, %v107
  %vm112 = vcmp.eq.s32.totalorder %v92, %v107
  %vm113 = vcmp.eq.s32.totalorder %v93, %v107
  %vm114 = vcmp.eq.s32.totalorder %v94, %v107
  %vm115 = vcmp.eq.s32.totalorder %v95, %v107
  %vm116 = vcmp.eq.s32.totalorder %v96, %v107
  %vm117 = vcmp.eq.s32.totalorder %v97, %v107
  %vm118 = vcmp.eq.s32.totalorder %v98, %v107
  %vm119 = vcmp.eq.s32.totalorder %v99, %v107
  %vm120 = vcmp.eq.s32.totalorder %v100, %v107
  %vm121 = vcmp.eq.s32.totalorder %v101, %v107
  %vm122 = vcmp.eq.s32.totalorder %v102, %v107
  %vm123 = vcmp.eq.s32.totalorder %v103, %v107
  %v124 = vsel %vm108, 1, 0
  %v125 = vsel %vm109, 1, 0
  %v126 = vsel %vm110, 1, 0
  %v127 = vsel %vm111, 1, 0
  %v128 = vsel %vm112, 1, 0
  %v129 = vsel %vm113, 1, 0
  %v130 = vsel %vm114, 1, 0
  %v131 = vsel %vm115, 1, 0
  %v132 = vsel %vm116, 1, 0
  %v133 = vsel %vm117, 1, 0
  %v134 = vsel %vm118, 1, 0
  %v135 = vsel %vm119, 1, 0
  %v136 = vsel %vm120, 1, 0
  %v137 = vsel %vm121, 1, 0
  %v138 = vsel %vm122, 1, 0
  %v139 = vsel %vm123, 1, 0
  %v140 = vcvt.s32.f32 %v124
  %v141 = vcvt.s32.f32 %v125
  %v142 = vcvt.s32.f32 %v126
  %v143 = vcvt.s32.f32 %v127
  %v144 = vcvt.s32.f32 %v128
  %v145 = vcvt.s32.f32 %v129
  %v146 = vcvt.s32.f32 %v130
  %v147 = vcvt.s32.f32 %v131
  %v148 = vcvt.s32.f32 %v132
  %v149 = vcvt.s32.f32 %v133
  %v150 = vcvt.s32.f32 %v134
  %v151 = vcvt.s32.f32 %v135
  %v152 = vcvt.s32.f32 %v136
  %v153 = vcvt.s32.f32 %v137
  %v154 = vcvt.s32.f32 %v138
  %v155 = vcvt.s32.f32 %v139
  %v156 = vld [vmem:[%s2] sm:$0xff]
  %v157 = vld [vmem:[%s2 + $0x8] sm:$0xff]
  %v158 = vld [vmem:[%s2 + $0x10] sm:$0xff]
  %v159 = vld [vmem:[%s2 + $0x18] sm:$0xff]
  %v160 = vld [vmem:[%s2 + $0x20] sm:$0xff]
  %v161 = vld [vmem:[%s2 + $0x28] sm:$0xff]
  %v162 = vld [vmem:[%s2 + $0x30] sm:$0xff]
  %v163 = vld [vmem:[%s2 + $0x38] sm:$0xff]
  %v164 = vld [vmem:[%s2 + $0x40] sm:$0xff]
  %v165 = vld [vmem:[%s2 + $0x48] sm:$0xff]
  %v166 = vld [vmem:[%s2 + $0x50] sm:$0xff]
  %v167 = vld [vmem:[%s2 + $0x58] sm:$0xff]
  %v168 = vld [vmem:[%s2 + $0x60] sm:$0xff]
  %v169 = vld [vmem:[%s2 + $0x68] sm:$0xff]
  %v170 = vld [vmem:[%s2 + $0x70] sm:$0xff]
  %v171 = vld [vmem:[%s2 + $0x78] sm:$0xff]
  %v172 = vld [vmem:[%s2 + $0x80] sm:$0xff]
  %v173 = vld [vmem:[%s2 + $0x88] sm:$0xff]
  %v174 = vld [vmem:[%s2 + $0x90] sm:$0xff]
  %v175 = vld [vmem:[%s2 + $0x98] sm:$0xff]
  %v176 = vld [vmem:[%s2 + $0xa0] sm:$0xff]
  %v177 = vld [vmem:[%s2 + $0xa8] sm:$0xff]
  %v178 = vld [vmem:[%s2 + $0xb0] sm:$0xff]
  %v179 = vld [vmem:[%s2 + $0xb8] sm:$0xff]
  %v180 = vld [vmem:[%s2 + $0xc0] sm:$0xff]
  %v181 = vld [vmem:[%s2 + $0xc8] sm:$0xff]
  %v182 = vld [vmem:[%s2 + $0xd0] sm:$0xff]
  %v183 = vld [vmem:[%s2 + $0xd8] sm:$0xff]
  %v184 = vld [vmem:[%s2 + $0xe0] sm:$0xff]
  %v185 = vld [vmem:[%s2 + $0xe8] sm:$0xff]
  %v186 = vld [vmem:[%s2 + $0xf0] sm:$0xff]
  %v187 = vld [vmem:[%s2 + $0xf8] sm:$0xff]
  %v188 = vld [vmem:[%s42] sm:$0xff]
  %v189 = vld [vmem:[%s42 + $0x8] sm:$0xff]
  %v190 = vld [vmem:[%s42 + $0x10] sm:$0xff]
  %v191 = vld [vmem:[%s42 + $0x18] sm:$0xff]
  %v192 = vld [vmem:[%s42 + $0x20] sm:$0xff]
  %v193 = vld [vmem:[%s42 + $0x28] sm:$0xff]
  %v194 = vld [vmem:[%s42 + $0x30] sm:$0xff]
  %v195 = vld [vmem:[%s42 + $0x38] sm:$0xff]
  %v196 = vld [vmem:[%s42 + $0x40] sm:$0xff]
  %v197 = vld [vmem:[%s42 + $0x48] sm:$0xff]
  %v198 = vld [vmem:[%s42 + $0x50] sm:$0xff]
  %v199 = vld [vmem:[%s42 + $0x58] sm:$0xff]
  %v200 = vld [vmem:[%s42 + $0x60] sm:$0xff]
  %v201 = vld [vmem:[%s42 + $0x68] sm:$0xff]
  %v202 = vld [vmem:[%s42 + $0x70] sm:$0xff]
  %v203 = vld [vmem:[%s42 + $0x78] sm:$0xff]
  %v204 = vld [vmem:[%s42 + $0x80] sm:$0xff]
  %v205 = vld [vmem:[%s42 + $0x88] sm:$0xff]
  %v206 = vld [vmem:[%s42 + $0x90] sm:$0xff]
  %v207 = vld [vmem:[%s42 + $0x98] sm:$0xff]
  %v208 = vld [vmem:[%s42 + $0xa0] sm:$0xff]
  %v209 = vld [vmem:[%s42 + $0xa8] sm:$0xff]
  %v210 = vld [vmem:[%s42 + $0xb0] sm:$0xff]
  %v211 = vld [vmem:[%s42 + $0xb8] sm:$0xff]
  %v212 = vld [vmem:[%s42 + $0xc0] sm:$0xff]
  %v213 = vld [vmem:[%s42 + $0xc8] sm:$0xff]
  %v214 = vld [vmem:[%s42 + $0xd0] sm:$0xff]
  %v215 = vld [vmem:[%s42 + $0xd8] sm:$0xff]
  %v216 = vld [vmem:[%s42 + $0xe0] sm:$0xff]
  %v217 = vld [vmem:[%s42 + $0xe8] sm:$0xff]
  %v218 = vld [vmem:[%s42 + $0xf0] sm:$0xff]
  %v219 = vld [vmem:[%s42 + $0xf8] sm:$0xff]
  %220 = vmatprep.subr.mxu0 %v219
  %221 = vmatpush1.msra.mxu0 %v218
  %222 = vmatprep.subr.mxu0 %v217
  %223 = vmatpush1.msra.mxu0 %v216
  %224 = vmatprep.subr.mxu0 %v215
  %225 = vmatpush1.msra.mxu0 %v214
  %226 = vmatprep.subr.mxu0 %v213
  %227 = vmatpush1.msra.mxu0 %v212
  %228 = vmatprep.subr.mxu0 %v211
  %229 = vmatpush1.msra.mxu0 %v210
  %230 = vmatprep.subr.mxu0 %v209
  %231 = vmatpush1.msra.mxu0 %v208
  %232 = vmatprep.subr.mxu0 %v207
  %233 = vmatpush1.msra.mxu0 %v206
  %234 = vmatprep.subr.mxu0 %v205
  %235 = vmatpush1.msra.mxu0 %v204
  %236 = vmatprep.subr.mxu0 %v203
  %237 = vmatpush1.msra.mxu0 %v202
  %238 = vmatprep.subr.mxu0 %v201
  %239 = vmatpush1.msra.mxu0 %v200
  %240 = vmatprep.subr.mxu0 %v199
  %241 = vmatpush1.msra.mxu0 %v198
  %242 = vmatprep.subr.mxu0 %v197
  %243 = vmatpush1.msra.mxu0 %v196
  %244 = vmatprep.subr.mxu0 %v195
  %245 = vmatpush1.msra.mxu0 %v194
  %246 = vmatprep.subr.mxu0 %v193
  %247 = vmatpush1.msra.mxu0 %v192
  %248 = vmatprep.subr.mxu0 %v191
  %249 = vmatpush1.msra.mxu0 %v190
  %250 = vmatprep.subr.mxu0 %v189
  %251 = vmatpush1.msra.mxu0 %v188
  %252 = vmatprep.subr.mxu0 0.0
  %253 = vmatpush2.msra.mxu0 0.0
  %254 = vmatprep.subr.mxu0 0.0
  %255 = vmatpush2.msra.mxu0 0.0
  %256 = vmatprep.subr.mxu0 0.0
  %257 = vmatpush2.msra.mxu0 0.0
  %258 = vmatprep.subr.mxu0 0.0
  %259 = vmatpush2.msra.mxu0 0.0
  %260 = vmatprep.subr.mxu0 0.0
  %261 = vmatpush2.msra.mxu0 0.0
  %262 = vmatprep.subr.mxu0 0.0
  %263 = vmatpush2.msra.mxu0 0.0
  %264 = vmatprep.subr.mxu0 0.0
  %265 = vmatpush2.msra.mxu0 0.0
  %266 = vmatprep.subr.mxu0 0.0
  %267 = vmatpush2.msra.mxu0 0.0
  %268 = vmatprep.subr.mxu0 0.0
  %269 = vmatpush2.msra.mxu0 0.0
  %270 = vmatprep.subr.mxu0 0.0
  %271 = vmatpush2.msra.mxu0 0.0
  %272 = vmatprep.subr.mxu0 0.0
  %273 = vmatpush2.msra.mxu0 0.0
  %274 = vmatprep.subr.mxu0 0.0
  %275 = vmatpush2.msra.mxu0 0.0
  %276 = vmatprep.subr.mxu0 0.0
  %277 = vmatpush2.msra.mxu0 0.0
  %278 = vmatprep.subr.mxu0 0.0
  %279 = vmatpush2.msra.mxu0 0.0
  %280 = vmatprep.subr.mxu0 0.0
  %281 = vmatpush2.msra.mxu0 0.0
  %282 = vmatprep.subr.mxu0 0.0
  %283 = vmatpush2.msra.mxu0 0.0
  %284 = vmatprep.mubr.f32.mxu0 0.0
  %285 = vmatmul.mubr.f32.gmra.mxu0 %v140
  %v286 = vpop.f32.mrf.mxu0
  %v287 = vadd.f32 0.0, %v286
  %v288 = vpop.f32.mrf.mxu0
  %v289 = vadd.f32 0.0, %v288
  %290 = vmatprep.mubr.f32.mxu0 0.0
  %291 = vmatmul.mubr.f32.gmra.mxu0 %v141
  %v292 = vpop.f32.mrf.mxu0
  %v293 = vadd.f32 0.0, %v292
  %v294 = vpop.f32.mrf.mxu0
  %v295 = vadd.f32 0.0, %v294
  %296 = vmatprep.mubr.f32.mxu0 0.0
  %297 = vmatmul.mubr.f32.gmra.mxu0 %v142
  %v298 = vpop.f32.mrf.mxu0
  %v299 = vadd.f32 0.0, %v298
  %v300 = vpop.f32.mrf.mxu0
  %v301 = vadd.f32 0.0, %v300
  %302 = vmatprep.mubr.f32.mxu0 0.0
  %303 = vmatmul.mubr.f32.gmra.mxu0 %v143
  %v304 = vpop.f32.mrf.mxu0
  %v305 = vadd.f32 0.0, %v304
  %v306 = vpop.f32.mrf.mxu0
  %v307 = vadd.f32 0.0, %v306
  %308 = vmatprep.mubr.f32.mxu0 0.0
  %309 = vmatmul.mubr.f32.gmra.mxu0 %v144
  %v310 = vpop.f32.mrf.mxu0
  %v311 = vadd.f32 0.0, %v310
  %v312 = vpop.f32.mrf.mxu0
  %v313 = vadd.f32 0.0, %v312
  %314 = vmatprep.mubr.f32.mxu0 0.0
  %315 = vmatmul.mubr.f32.gmra.mxu0 %v145
  %v316 = vpop.f32.mrf.mxu0
  %v317 = vadd.f32 0.0, %v316
  %v318 = vpop.f32.mrf.mxu0
  %v319 = vadd.f32 0.0, %v318
  %320 = vmatprep.mubr.f32.mxu0 0.0
  %321 = vmatmul.mubr.f32.gmra.mxu0 %v146
  %v322 = vpop.f32.mrf.mxu0
  %v323 = vadd.f32 0.0, %v322
  %v324 = vpop.f32.mrf.mxu0
  %v325 = vadd.f32 0.0, %v324
  %326 = vmatprep.mubr.f32.mxu0 0.0
  %327 = vmatmul.mubr.f32.gmra.mxu0 %v147
  %v328 = vpop.f32.mrf.mxu0
  %v329 = vadd.f32 0.0, %v328
  %v330 = vpop.f32.mrf.mxu0
  %v331 = vadd.f32 0.0, %v330
  %332 = vmatprep.mubr.f32.mxu0 0.0
  %333 = vmatmul.mubr.f32.gmra.mxu0 %v148
  %v334 = vpop.f32.mrf.mxu0
  %v335 = vadd.f32 0.0, %v334
  %v336 = vpop.f32.mrf.mxu0
  %v337 = vadd.f32 0.0, %v336
  %338 = vmatprep.mubr.f32.mxu0 0.0
  %339 = vmatmul.mubr.f32.gmra.mxu0 %v149
  %v340 = vpop.f32.mrf.mxu0
  %v341 = vadd.f32 0.0, %v340
  %v342 = vpop.f32.mrf.mxu0
  %v343 = vadd.f32 0.0, %v342
  %344 = vmatprep.mubr.f32.mxu0 0.0
  %345 = vmatmul.mubr.f32.gmra.mxu0 %v150
  %v346 = vpop.f32.mrf.mxu0
  %v347 = vadd.f32 0.0, %v346
  %v348 = vpop.f32.mrf.mxu0
  %v349 = vadd.f32 0.0, %v348
  %350 = vmatprep.mubr.f32.mxu0 0.0
  %351 = vmatmul.mubr.f32.gmra.mxu0 %v151
  %v352 = vpop.f32.mrf.mxu0
  %v353 = vadd.f32 0.0, %v352
  %v354 = vpop.f32.mrf.mxu0
  %v355 = vadd.f32 0.0, %v354
  %356 = vmatprep.mubr.f32.mxu0 0.0
  %357 = vmatmul.mubr.f32.gmra.mxu0 %v152
  %v358 = vpop.f32.mrf.mxu0
  %v359 = vadd.f32 0.0, %v358
  %v360 = vpop.f32.mrf.mxu0
  %v361 = vadd.f32 0.0, %v360
  %362 = vmatprep.mubr.f32.mxu0 0.0
  %363 = vmatmul.mubr.f32.gmra.mxu0 %v153
  %v364 = vpop.f32.mrf.mxu0
  %v365 = vadd.f32 0.0, %v364
  %v366 = vpop.f32.mrf.mxu0
  %v367 = vadd.f32 0.0, %v366
  %368 = vmatprep.mubr.f32.mxu0 0.0
  %369 = vmatmul.mubr.f32.gmra.mxu0 %v154
  %v370 = vpop.f32.mrf.mxu0
  %v371 = vadd.f32 0.0, %v370
  %v372 = vpop.f32.mrf.mxu0
  %v373 = vadd.f32 0.0, %v372
  %374 = vmatprep.mubr.f32.mxu0 0.0
  %375 = vmatmul.mubr.f32.gmra.mxu0 %v155
  %v376 = vpop.f32.mrf.mxu0
  %v377 = vadd.f32 0.0, %v376
  %v378 = vpop.f32.mrf.mxu0
  %v379 = vadd.f32 0.0, %v378
  %380 = vdwg.mxu0
  %v381 = vadd.f32 %v156, %v287
  %v382 = vadd.f32 %v157, %v289
  %v383 = vadd.f32 %v158, %v293
  %v384 = vadd.f32 %v159, %v295
  %v385 = vadd.f32 %v160, %v299
  %v386 = vadd.f32 %v161, %v301
  %v387 = vadd.f32 %v162, %v305
  %v388 = vadd.f32 %v163, %v307
  %v389 = vadd.f32 %v164, %v311
  %v390 = vadd.f32 %v165, %v313
  %v391 = vadd.f32 %v166, %v317
  %v392 = vadd.f32 %v167, %v319
  %v393 = vadd.f32 %v168, %v323
  %v394 = vadd.f32 %v169, %v325
  %v395 = vadd.f32 %v170, %v329
  %v396 = vadd.f32 %v171, %v331
  %v397 = vadd.f32 %v172, %v335
  %v398 = vadd.f32 %v173, %v337
  %v399 = vadd.f32 %v174, %v341
  %v400 = vadd.f32 %v175, %v343
  %v401 = vadd.f32 %v176, %v347
  %v402 = vadd.f32 %v177, %v349
  %v403 = vadd.f32 %v178, %v353
  %v404 = vadd.f32 %v179, %v355
  %v405 = vadd.f32 %v180, %v359
  %v406 = vadd.f32 %v181, %v361
  %v407 = vadd.f32 %v182, %v365
  %v408 = vadd.f32 %v183, %v367
  %v409 = vadd.f32 %v184, %v371
  %v410 = vadd.f32 %v185, %v373
  %v411 = vadd.f32 %v186, %v377
  %v412 = vadd.f32 %v187, %v379
  %413 = vst [vmem:[%s2] sm:$0xff] %v381
  %414 = vst [vmem:[%s2 + $0x8] sm:$0xff] %v382
  %415 = vst [vmem:[%s2 + $0x10] sm:$0xff] %v383
  %416 = vst [vmem:[%s2 + $0x18] sm:$0xff] %v384
  %417 = vst [vmem:[%s2 + $0x20] sm:$0xff] %v385
  %418 = vst [vmem:[%s2 + $0x28] sm:$0xff] %v386
  %419 = vst [vmem:[%s2 + $0x30] sm:$0xff] %v387
  %420 = vst [vmem:[%s2 + $0x38] sm:$0xff] %v388
  %421 = vst [vmem:[%s2 + $0x40] sm:$0xff] %v389
  %422 = vst [vmem:[%s2 + $0x48] sm:$0xff] %v390
  %423 = vst [vmem:[%s2 + $0x50] sm:$0xff] %v391
  %424 = vst [vmem:[%s2 + $0x58] sm:$0xff] %v392
  %425 = vst [vmem:[%s2 + $0x60] sm:$0xff] %v393
  %426 = vst [vmem:[%s2 + $0x68] sm:$0xff] %v394
  %427 = vst [vmem:[%s2 + $0x70] sm:$0xff] %v395
  %428 = vst [vmem:[%s2 + $0x78] sm:$0xff] %v396
  %429 = vst [vmem:[%s2 + $0x80] sm:$0xff] %v397
  %430 = vst [vmem:[%s2 + $0x88] sm:$0xff] %v398
  %431 = vst [vmem:[%s2 + $0x90] sm:$0xff] %v399
  %432 = vst [vmem:[%s2 + $0x98] sm:$0xff] %v400
  %433 = vst [vmem:[%s2 + $0xa0] sm:$0xff] %v401
  %434 = vst [vmem:[%s2 + $0xa8] sm:$0xff] %v402
  %435 = vst [vmem:[%s2 + $0xb0] sm:$0xff] %v403
  %436 = vst [vmem:[%s2 + $0xb8] sm:$0xff] %v404
  %437 = vst [vmem:[%s2 + $0xc0] sm:$0xff] %v405
  %438 = vst [vmem:[%s2 + $0xc8] sm:$0xff] %v406
  %439 = vst [vmem:[%s2 + $0xd0] sm:$0xff] %v407
  %440 = vst [vmem:[%s2 + $0xd8] sm:$0xff] %v408
  %441 = vst [vmem:[%s2 + $0xe0] sm:$0xff] %v409
  %442 = vst [vmem:[%s2 + $0xe8] sm:$0xff] %v410
  %443 = vst [vmem:[%s2 + $0xf0] sm:$0xff] %v411
  %444 = vst [vmem:[%s2 + $0xf8] sm:$0xff] %v412
  // Predicated region
  $region14: #{jj_norm_pallas.2} parent=0 // pred_check
    _
  $region15: #{jj_norm_pallas.2} parent=0 // pred_check_branch
    %446 = sbr.rel (0) target = $region17
  $region16: #{jj_norm_pallas.2} parent=0 // pred_region
    _
  $region17: #{jj_norm_pallas.2} parent=0 // pred_fallthru
    _
  // Predicated region
  $region18: #{jj_norm_pallas.2} parent=0 // pred_check
    _
  $region19: #{jj_norm_pallas.2} parent=0 // pred_check_branch
    %448 = sbr.rel (0) target = $region21
  $region20: #{jj_norm_pallas.2} parent=0 // pred_region
    _
  $region21: #{jj_norm_pallas.2} parent=0 // pred_fallthru
    _

// kernel: jj_norm_pallas.3
$region0: #{jj_norm_pallas.3}
  #allocation0 [shape = 'u32[]', space=smem, size = 0x4, offset = 0x4, fixed_abs, tag = 'smem constant byte address 0x4 - core index']
  #allocation1 [shape = 'u32[144,128]{1,0:T(1,128)}', space=vmem, size = 0x12000, scoped, tag = 'internal scratch']
  %s0 = inlined_call_operand.vmem [shape: f32[128,256], index: 0, kind: input, shape index: {}]
  %s1 = inlined_call_operand.vmem [shape: s32[128,1], index: 1, kind: input, shape index: {}]
  %s2 = inlined_call_operand.vmem [shape: f32[128,128], index: 2, kind: input, shape index: {}]
  %s3 = inlined_call_operand.vmem [shape: f32[128,128], index: 3, kind: input, shape index: {}]
  %s4 = inlined_call_operand.vmem [shape: f32[128,128], index: 4, kind: output, shape index: {}]
  %s5 = sld [smem:[#allocation0]]
  $region64: #{jj_norm_pallas.3} parent=0
    _
  %s7 = ssub.s32 1, %s5
  %s8 = scalar_select 0, %s7, %s5
  $region1: #{jj_norm_pallas.3} parent=0
    #allocation2 [shape = 'u8[65536]{0}', space=vmem, size = 0x10000, scoped, tag = 'input window, operand 0, single buffered']
    // Predicated region
    $region2: #{jj_norm_pallas.3} parent=1 // pred_check
      _
    $region3: #{jj_norm_pallas.3} parent=1 // pred_check_branch
      %10 = sbr.rel (0) target = $region5
    $region4: #{jj_norm_pallas.3} parent=1 // pred_region
      // Predicated region
      $region6: #{jj_norm_pallas.3} parent=4 // pred_check
        _
      $region7: #{jj_norm_pallas.3} parent=4 // pred_check_branch
        %12 = sbr.rel (0) target = $region9
      $region8: #{jj_norm_pallas.3} parent=4 // pred_region
        // Predicated region
        $region10: #{jj_norm_pallas.3} parent=8 // pred_check
          _
        $region11: #{jj_norm_pallas.3} parent=8 // pred_check_branch
          %14 = sbr.rel (0) target = $region13
        $region12: #{jj_norm_pallas.3} parent=8 // pred_region
          // Predicated region
          $region25: #{jj_norm_pallas.3} parent=12 // pred_check
            _
          $region26: #{jj_norm_pallas.3} parent=12 // pred_check_branch
            %60 = sbr.rel (0) target = $region28
          $region27: #{jj_norm_pallas.3} parent=12 // pred_region
            loop: start=0, step=1, limit=1
            $region29: #{jj_norm_pallas.3} parent=27 // loop_pre_header
              _
            $region30: #{jj_norm_pallas.3} parent=27 // loop_header
              %s62 = sphi 0, %s66
              %p63 = scmp.ge.s32.totalorder %s62, 1
              %s67 = sphi %s0, %s0
              %s68 = sphi [#allocation2], [#allocation2]
            $region31: #{jj_norm_pallas.3} parent=27 // loop_header_branch
              %65 = sbr.rel (%p63) target = $region35
            $region32: #{jj_norm_pallas.3} parent=27 // loop_body
              %v69 = vld [vmem:[%s67] sm:$0xff]
              %70 = vst [vmem:[%s68] sm:$0xff] %v69
              %v71 = vld [vmem:[%s67 + $0x10] sm:$0xff]
              %72 = vst [vmem:[%s68 + $0x8] sm:$0xff] %v71
              %v73 = vld [vmem:[%s67 + $0x20] sm:$0xff]
              %74 = vst [vmem:[%s68 + $0x10] sm:$0xff] %v73
              %v75 = vld [vmem:[%s67 + $0x30] sm:$0xff]
              %76 = vst [vmem:[%s68 + $0x18] sm:$0xff] %v75
              %v77 = vld [vmem:[%s67 + $0x40] sm:$0xff]
              %78 = vst [vmem:[%s68 + $0x20] sm:$0xff] %v77
              %v79 = vld [vmem:[%s67 + $0x50] sm:$0xff]
              %80 = vst [vmem:[%s68 + $0x28] sm:$0xff] %v79
              %v81 = vld [vmem:[%s67 + $0x60] sm:$0xff]
              %82 = vst [vmem:[%s68 + $0x30] sm:$0xff] %v81
              %v83 = vld [vmem:[%s67 + $0x70] sm:$0xff]
              %84 = vst [vmem:[%s68 + $0x38] sm:$0xff] %v83
              %v85 = vld [vmem:[%s67 + $0x80] sm:$0xff]
              %86 = vst [vmem:[%s68 + $0x40] sm:$0xff] %v85
              %v87 = vld [vmem:[%s67 + $0x90] sm:$0xff]
              %88 = vst [vmem:[%s68 + $0x48] sm:$0xff] %v87
              %v89 = vld [vmem:[%s67 + $0xa0] sm:$0xff]
              %90 = vst [vmem:[%s68 + $0x50] sm:$0xff] %v89
              %v91 = vld [vmem:[%s67 + $0xb0] sm:$0xff]
              %92 = vst [vmem:[%s68 + $0x58] sm:$0xff] %v91
              %v93 = vld [vmem:[%s67 + $0xc0] sm:$0xff]
              %94 = vst [vmem:[%s68 + $0x60] sm:$0xff] %v93
              %v95 = vld [vmem:[%s67 + $0xd0] sm:$0xff]
              %96 = vst [vmem:[%s68 + $0x68] sm:$0xff] %v95
              %v97 = vld [vmem:[%s67 + $0xe0] sm:$0xff]
              %98 = vst [vmem:[%s68 + $0x70] sm:$0xff] %v97
              %v99 = vld [vmem:[%s67 + $0xf0] sm:$0xff]
              %100 = vst [vmem:[%s68 + $0x78] sm:$0xff] %v99
            $region33: #{jj_norm_pallas.3} parent=27 // loop_footer
              %s66 = sadd.s32 1, %s62
            $region34: #{jj_norm_pallas.3} parent=27 // loop_footer_branch
              %61 = sbr.rel target = $region30
            $region35: #{jj_norm_pallas.3} parent=27 // loop_exit
              _
          $region28: #{jj_norm_pallas.3} parent=12 // pred_fallthru
            _
          // Predicated region
          $region36: #{jj_norm_pallas.3} parent=12 // pred_check
            _
          $region37: #{jj_norm_pallas.3} parent=12 // pred_check_branch
            %102 = sbr.rel target = $region39
          $region38: #{jj_norm_pallas.3} parent=12 // pred_region
            _
          $region39: #{jj_norm_pallas.3} parent=12 // pred_fallthru
            _
        $region13: #{jj_norm_pallas.3} parent=8 // pred_fallthru
          _
        // Predicated region
        $region14: #{jj_norm_pallas.3} parent=8 // pred_check
          _
        $region15: #{jj_norm_pallas.3} parent=8 // pred_check_branch
          %16 = sbr.rel target = $region17
        $region16: #{jj_norm_pallas.3} parent=8 // pred_region
          %s18 = ssub.s32 256, 1
          loop: start=0, step=1, limit=1
          $region18: #{jj_norm_pallas.3} parent=16 // loop_pre_header
            _
          $region19: #{jj_norm_pallas.3} parent=16 // loop_header
            %s20 = sphi 0, %s24
            %p21 = scmp.ge.s32.totalorder %s20, 1
            %s25 = sphi %s0, %s0
            %s26 = sphi [#allocation2], [#allocation2]
          $region20: #{jj_norm_pallas.3} parent=16 // loop_header_branch
            %23 = sbr.rel (%p21) target = $region24
          $region21: #{jj_norm_pallas.3} parent=16 // loop_body
            %v27 = vld [vmem:[%s25] sm:%s18]
            %28 = vst [vmem:[%s26] sm:%s18] %v27
            %v29 = vld [vmem:[%s25 + $0x10] sm:%s18]
            %30 = vst [vmem:[%s26 + $0x8] sm:%s18] %v29
            %v31 = vld [vmem:[%s25 + $0x20] sm:%s18]
            %32 = vst [vmem:[%s26 + $0x10] sm:%s18] %v31
            %v33 = vld [vmem:[%s25 + $0x30] sm:%s18]
            %34 = vst [vmem:[%s26 + $0x18] sm:%s18] %v33
            %v35 = vld [vmem:[%s25 + $0x40] sm:%s18]
            %36 = vst [vmem:[%s26 + $0x20] sm:%s18] %v35
            %v37 = vld [vmem:[%s25 + $0x50] sm:%s18]
            %38 = vst [vmem:[%s26 + $0x28] sm:%s18] %v37
            %v39 = vld [vmem:[%s25 + $0x60] sm:%s18]
            %40 = vst [vmem:[%s26 + $0x30] sm:%s18] %v39
            %v41 = vld [vmem:[%s25 + $0x70] sm:%s18]
            %42 = vst [vmem:[%s26 + $0x38] sm:%s18] %v41
            %v43 = vld [vmem:[%s25 + $0x80] sm:%s18]
            %44 = vst [vmem:[%s26 + $0x40] sm:%s18] %v43
            %v45 = vld [vmem:[%s25 + $0x90] sm:%s18]
            %46 = vst [vmem:[%s26 + $0x48] sm:%s18] %v45
            %v47 = vld [vmem:[%s25 + $0xa0] sm:%s18]
            %48 = vst [vmem:[%s26 + $0x50] sm:%s18] %v47
            %v49 = vld [vmem:[%s25 + $0xb0] sm:%s18]
            %50 = vst [vmem:[%s26 + $0x58] sm:%s18] %v49
            %v51 = vld [vmem:[%s25 + $0xc0] sm:%s18]
            %52 = vst [vmem:[%s26 + $0x60] sm:%s18] %v51
            %v53 = vld [vmem:[%s25 + $0xd0] sm:%s18]
            %54 = vst [vmem:[%s26 + $0x68] sm:%s18] %v53
            %v55 = vld [vmem:[%s25 + $0xe0] sm:%s18]
            %56 = vst [vmem:[%s26 + $0x70] sm:%s18] %v55
            %v57 = vld [vmem:[%s25 + $0xf0] sm:%s18]
            %58 = vst [vmem:[%s26 + $0x78] sm:%s18] %v57
          $region22: #{jj_norm_pallas.3} parent=16 // loop_footer
            %s24 = sadd.s32 1, %s20
          $region23: #{jj_norm_pallas.3} parent=16 // loop_footer_branch
            %19 = sbr.rel target = $region19
          $region24: #{jj_norm_pallas.3} parent=16 // loop_exit
            _
        $region17: #{jj_norm_pallas.3} parent=8 // pred_fallthru
          _
      $region9: #{jj_norm_pallas.3} parent=4 // pred_fallthru
        _
      %103 = vnop
    $region5: #{jj_norm_pallas.3} parent=1 // pred_fallthru
      _
    // Predicated region
    $region40: #{jj_norm_pallas.3} parent=1 // pred_check
      _
    $region41: #{jj_norm_pallas.3} parent=1 // pred_check_branch
      %105 = sbr.rel (0) target = $region43
    $region42: #{jj_norm_pallas.3} parent=1 // pred_region
      _
    $region43: #{jj_norm_pallas.3} parent=1 // pred_fallthru
      _
    // Predicated region
    $region44: #{jj_norm_pallas.3} parent=1 // pred_check
      _
    $region45: #{jj_norm_pallas.3} parent=1 // pred_check_branch
      %107 = sbr.rel (0) target = $region47
    $region46: #{jj_norm_pallas.3} parent=1 // pred_region
      _
    $region47: #{jj_norm_pallas.3} parent=1 // pred_fallthru
      _
    // Predicated region
    $region48: #{jj_norm_pallas.3} parent=1 // pred_check
      _
    $region49: #{jj_norm_pallas.3} parent=1 // pred_check_branch
      %109 = sbr.rel (0) target = $region51
    $region50: #{jj_norm_pallas.3} parent=1 // pred_region
      _
    $region51: #{jj_norm_pallas.3} parent=1 // pred_fallthru
      _
    // Predicated region
    $region52: #{jj_norm_pallas.3} parent=1 // pred_check
      _
    $region53: #{jj_norm_pallas.3} parent=1 // pred_check_branch
      %111 = sbr.rel (0) target = $region55
    $region54: #{jj_norm_pallas.3} parent=1 // pred_region
      _
    $region55: #{jj_norm_pallas.3} parent=1 // pred_fallthru
      _
    %v112 = vld [vmem:[%s1] sm:$0xff]
    %v113 = vld [vmem:[%s1 + $0x8] sm:$0xff]
    %v114 = vld [vmem:[%s1 + $0x10] sm:$0xff]
    %v115 = vld [vmem:[%s1 + $0x18] sm:$0xff]
    %v116 = vld [vmem:[%s1 + $0x20] sm:$0xff]
    %v117 = vld [vmem:[%s1 + $0x28] sm:$0xff]
    %v118 = vld [vmem:[%s1 + $0x30] sm:$0xff]
    %v119 = vld [vmem:[%s1 + $0x38] sm:$0xff]
    %v120 = vld [vmem:[%s1 + $0x40] sm:$0xff]
    %v121 = vld [vmem:[%s1 + $0x48] sm:$0xff]
    %v122 = vld [vmem:[%s1 + $0x50] sm:$0xff]
    %v123 = vld [vmem:[%s1 + $0x58] sm:$0xff]
    %v124 = vld [vmem:[%s1 + $0x60] sm:$0xff]
    %v125 = vld [vmem:[%s1 + $0x68] sm:$0xff]
    %v126 = vld [vmem:[%s1 + $0x70] sm:$0xff]
    %v127 = vld [vmem:[%s1 + $0x78] sm:$0xff]
    %v128 = vlaneseq
    %v129 = vand.u32 %v128, 127
    %130 = vset.pattern.permute.xlu0 0
    %131 = vperm.xlu0 %130, %v112
    %v132 = vpop.permute.xlu0 %131
    %133 = vset.pattern.permute.xlu0 0
    %134 = vperm.xlu0 %133, %v113
    %v135 = vpop.permute.xlu0 %134
    %136 = vset.pattern.permute.xlu0 0
    %137 = vperm.xlu0 %136, %v114
    %v138 = vpop.permute.xlu0 %137
    %139 = vset.pattern.permute.xlu0 0
    %140 = vperm.xlu0 %139, %v115
    %v141 = vpop.permute.xlu0 %140
    %142 = vset.pattern.permute.xlu0 0
    %143 = vperm.xlu0 %142, %v116
    %v144 = vpop.permute.xlu0 %143
    %145 = vset.pattern.permute.xlu0 0
    %146 = vperm.xlu0 %145, %v117
    %v147 = vpop.permute.xlu0 %146
    %148 = vset.pattern.permute.xlu0 0
    %149 = vperm.xlu0 %148, %v118
    %v150 = vpop.permute.xlu0 %149
    %151 = vset.pattern.permute.xlu0 0
    %152 = vperm.xlu0 %151, %v119
    %v153 = vpop.permute.xlu0 %152
    %154 = vset.pattern.permute.xlu0 0
    %155 = vperm.xlu0 %154, %v120
    %v156 = vpop.permute.xlu0 %155
    %157 = vset.pattern.permute.xlu0 0
    %158 = vperm.xlu0 %157, %v121
    %v159 = vpop.permute.xlu0 %158
    %160 = vset.pattern.permute.xlu0 0
    %161 = vperm.xlu0 %160, %v122
    %v162 = vpop.permute.xlu0 %161
    %163 = vset.pattern.permute.xlu0 0
    %164 = vperm.xlu0 %163, %v123
    %v165 = vpop.permute.xlu0 %164
    %166 = vset.pattern.permute.xlu0 0
    %167 = vperm.xlu0 %166, %v124
    %v168 = vpop.permute.xlu0 %167
    %169 = vset.pattern.permute.xlu0 0
    %170 = vperm.xlu0 %169, %v125
    %v171 = vpop.permute.xlu0 %170
    %172 = vset.pattern.permute.xlu0 0
    %173 = vperm.xlu0 %172, %v126
    %v174 = vpop.permute.xlu0 %173
    %175 = vset.pattern.permute.xlu0 0
    %176 = vperm.xlu0 %175, %v127
    %v177 = vpop.permute.xlu0 %176
    %vm178 = vcmp.eq.s32.totalorder %v129, %v132
    %vm179 = vcmp.eq.s32.totalorder %v129, %v135
    %vm180 = vcmp.eq.s32.totalorder %v129, %v138
    %vm181 = vcmp.eq.s32.totalorder %v129, %v141
    %vm182 = vcmp.eq.s32.totalorder %v129, %v144
    %vm183 = vcmp.eq.s32.totalorder %v129, %v147
    %vm184 = vcmp.eq.s32.totalorder %v129, %v150
    %vm185 = vcmp.eq.s32.totalorder %v129, %v153
    %vm186 = vcmp.eq.s32.totalorder %v129, %v156
    %vm187 = vcmp.eq.s32.totalorder %v129, %v159
    %vm188 = vcmp.eq.s32.totalorder %v129, %v162
    %vm189 = vcmp.eq.s32.totalorder %v129, %v165
    %vm190 = vcmp.eq.s32.totalorder %v129, %v168
    %vm191 = vcmp.eq.s32.totalorder %v129, %v171
    %vm192 = vcmp.eq.s32.totalorder %v129, %v174
    %vm193 = vcmp.eq.s32.totalorder %v129, %v177
    %v194 = vsel %vm178, 1, 0
    %v195 = vsel %vm179, 1, 0
    %v196 = vsel %vm180, 1, 0
    %v197 = vsel %vm181, 1, 0
    %v198 = vsel %vm182, 1, 0
    %v199 = vsel %vm183, 1, 0
    %v200 = vsel %vm184, 1, 0
    %v201 = vsel %vm185, 1, 0
    %v202 = vsel %vm186, 1, 0
    %v203 = vsel %vm187, 1, 0
    %v204 = vsel %vm188, 1, 0
    %v205 = vsel %vm189, 1, 0
    %v206 = vsel %vm190, 1, 0
    %v207 = vsel %vm191, 1, 0
    %v208 = vsel %vm192, 1, 0
    %v209 = vsel %vm193, 1, 0
    %v210 = vcvt.s32.f32 %v194
    %v211 = vcvt.s32.f32 %v195
    %v212 = vcvt.s32.f32 %v196
    %v213 = vcvt.s32.f32 %v197
    %v214 = vcvt.s32.f32 %v198
    %v215 = vcvt.s32.f32 %v199
    %v216 = vcvt.s32.f32 %v200
    %v217 = vcvt.s32.f32 %v201
    %v218 = vcvt.s32.f32 %v202
    %v219 = vcvt.s32.f32 %v203
    %v220 = vcvt.s32.f32 %v204
    %v221 = vcvt.s32.f32 %v205
    %v222 = vcvt.s32.f32 %v206
    %v223 = vcvt.s32.f32 %v207
    %v224 = vcvt.s32.f32 %v208
    %v225 = vcvt.s32.f32 %v209
    %v226 = vld [vmem:[%s2] sm:$0xff]
    %v227 = vld [vmem:[%s2 + $0x8] sm:$0xff]
    %v228 = vld [vmem:[%s2 + $0x10] sm:$0xff]
    %v229 = vld [vmem:[%s2 + $0x18] sm:$0xff]
    %v230 = vld [vmem:[%s2 + $0x20] sm:$0xff]
    %v231 = vld [vmem:[%s2 + $0x28] sm:$0xff]
    %v232 = vld [vmem:[%s2 + $0x30] sm:$0xff]
    %v233 = vld [vmem:[%s2 + $0x38] sm:$0xff]
    %v234 = vld [vmem:[%s2 + $0x40] sm:$0xff]
    %v235 = vld [vmem:[%s2 + $0x48] sm:$0xff]
    %v236 = vld [vmem:[%s2 + $0x50] sm:$0xff]
    %v237 = vld [vmem:[%s2 + $0x58] sm:$0xff]
    %v238 = vld [vmem:[%s2 + $0x60] sm:$0xff]
    %v239 = vld [vmem:[%s2 + $0x68] sm:$0xff]
    %v240 = vld [vmem:[%s2 + $0x70] sm:$0xff]
    %v241 = vld [vmem:[%s2 + $0x78] sm:$0xff]
    %242 = vmatprep.subr.mxu0 0.0
    %243 = vmatpush1.msra.mxu0 %v241
    %244 = vmatprep.subr.mxu0 0.0
    %245 = vmatpush1.msra.mxu0 %v240
    %246 = vmatprep.subr.mxu0 0.0
    %247 = vmatpush1.msra.mxu0 %v239
    %248 = vmatprep.subr.mxu0 0.0
    %249 = vmatpush1.msra.mxu0 %v238
    %250 = vmatprep.subr.mxu0 0.0
    %251 = vmatpush1.msra.mxu0 %v237
    %252 = vmatprep.subr.mxu0 0.0
    %253 = vmatpush1.msra.mxu0 %v236
    %254 = vmatprep.subr.mxu0 0.0
    %255 = vmatpush1.msra.mxu0 %v235
    %256 = vmatprep.subr.mxu0 0.0
    %257 = vmatpush1.msra.mxu0 %v234
    %258 = vmatprep.subr.mxu0 0.0
    %259 = vmatpush1.msra.mxu0 %v233
    %260 = vmatprep.subr.mxu0 0.0
    %261 = vmatpush1.msra.mxu0 %v232
    %262 = vmatprep.subr.mxu0 0.0
    %263 = vmatpush1.msra.mxu0 %v231
    %264 = vmatprep.subr.mxu0 0.0
    %265 = vmatpush1.msra.mxu0 %v230
    %266 = vmatprep.subr.mxu0 0.0
    %267 = vmatpush1.msra.mxu0 %v229
    %268 = vmatprep.subr.mxu0 0.0
    %269 = vmatpush1.msra.mxu0 %v228
    %270 = vmatprep.subr.mxu0 0.0
    %271 = vmatpush1.msra.mxu0 %v227
    %272 = vmatprep.subr.mxu0 0.0
    %273 = vmatpush1.msra.mxu0 %v226
    %274 = vmatprep.subr.mxu0 0.0
    %275 = vmatpush2.msra.mxu0 0.0
    %276 = vmatprep.subr.mxu0 0.0
    %277 = vmatpush2.msra.mxu0 0.0
    %278 = vmatprep.subr.mxu0 0.0
    %279 = vmatpush2.msra.mxu0 0.0
    %280 = vmatprep.subr.mxu0 0.0
    %281 = vmatpush2.msra.mxu0 0.0
    %282 = vmatprep.subr.mxu0 0.0
    %283 = vmatpush2.msra.mxu0 0.0
    %284 = vmatprep.subr.mxu0 0.0
    %285 = vmatpush2.msra.mxu0 0.0
    %286 = vmatprep.subr.mxu0 0.0
    %287 = vmatpush2.msra.mxu0 0.0
    %288 = vmatprep.subr.mxu0 0.0
    %289 = vmatpush2.msra.mxu0 0.0
    %290 = vmatprep.subr.mxu0 0.0
    %291 = vmatpush2.msra.mxu0 0.0
    %292 = vmatprep.subr.mxu0 0.0
    %293 = vmatpush2.msra.mxu0 0.0
    %294 = vmatprep.subr.mxu0 0.0
    %295 = vmatpush2.msra.mxu0 0.0
    %296 = vmatprep.subr.mxu0 0.0
    %297 = vmatpush2.msra.mxu0 0.0
    %298 = vmatprep.subr.mxu0 0.0
    %299 = vmatpush2.msra.mxu0 0.0
    %300 = vmatprep.subr.mxu0 0.0
    %301 = vmatpush2.msra.mxu0 0.0
    %302 = vmatprep.subr.mxu0 0.0
    %303 = vmatpush2.msra.mxu0 0.0
    %304 = vmatprep.subr.mxu0 0.0
    %305 = vmatpush2.msra.mxu0 0.0
    %306 = vmatprep.mubr.f32.mxu0 0.0
    %307 = vmatmul.mubr.f32.gmra.mxu0 %v210
    %v308 = vpop.f32.mrf.mxu0
    %v309 = vadd.f32 0.0, %v308
    %v310 = vpop.f32.mrf.mxu0
    %311 = vmatprep.mubr.f32.mxu0 0.0
    %312 = vmatmul.mubr.f32.gmra.mxu0 %v211
    %v313 = vpop.f32.mrf.mxu0
    %v314 = vadd.f32 0.0, %v313
    %v315 = vpop.f32.mrf.mxu0
    %316 = vmatprep.mubr.f32.mxu0 0.0
    %317 = vmatmul.mubr.f32.gmra.mxu0 %v212
    %v318 = vpop.f32.mrf.mxu0
    %v319 = vadd.f32 0.0, %v318
    %v320 = vpop.f32.mrf.mxu0
    %321 = vmatprep.mubr.f32.mxu0 0.0
    %322 = vmatmul.mubr.f32.gmra.mxu0 %v213
    %v323 = vpop.f32.mrf.mxu0
    %v324 = vadd.f32 0.0, %v323
    %v325 = vpop.f32.mrf.mxu0
    %326 = vmatprep.mubr.f32.mxu0 0.0
    %327 = vmatmul.mubr.f32.gmra.mxu0 %v214
    %v328 = vpop.f32.mrf.mxu0
    %v329 = vadd.f32 0.0, %v328
    %v330 = vpop.f32.mrf.mxu0
    %331 = vmatprep.mubr.f32.mxu0 0.0
    %332 = vmatmul.mubr.f32.gmra.mxu0 %v215
    %v333 = vpop.f32.mrf.mxu0
    %v334 = vadd.f32 0.0, %v333
    %v335 = vpop.f32.mrf.mxu0
    %336 = vmatprep.mubr.f32.mxu0 0.0
    %337 = vmatmul.mubr.f32.gmra.mxu0 %v216
    %v338 = vpop.f32.mrf.mxu0
    %v339 = vadd.f32 0.0, %v338
    %v340 = vpop.f32.mrf.mxu0
    %341 = vmatprep.mubr.f32.mxu0 0.0
    %342 = vmatmul.mubr.f32.gmra.mxu0 %v217
    %v343 = vpop.f32.mrf.mxu0
    %v344 = vadd.f32 0.0, %v343
    %v345 = vpop.f32.mrf.mxu0
    %346 = vmatprep.mubr.f32.mxu0 0.0
    %347 = vmatmul.mubr.f32.gmra.mxu0 %v218
    %v348 = vpop.f32.mrf.mxu0
    %v349 = vadd.f32 0.0, %v348
    %v350 = vpop.f32.mrf.mxu0
    %351 = vmatprep.mubr.f32.mxu0 0.0
    %352 = vmatmul.mubr.f32.gmra.mxu0 %v219
    %v353 = vpop.f32.mrf.mxu0
    %v354 = vadd.f32 0.0, %v353
    %v355 = vpop.f32.mrf.mxu0
    %356 = vmatprep.mubr.f32.mxu0 0.0
    %357 = vmatmul.mubr.f32.gmra.mxu0 %v220
    %v358 = vpop.f32.mrf.mxu0
    %v359 = vadd.f32 0.0, %v358
    %v360 = vpop.f32.mrf.mxu0
    %361 = vmatprep.mubr.f32.mxu0 0.0
    %362 = vmatmul.mubr.f32.gmra.mxu0 %v221
    %v363 = vpop.f32.mrf.mxu0
    %v364 = vadd.f32 0.0, %v363
    %v365 = vpop.f32.mrf.mxu0
    %366 = vmatprep.mubr.f32.mxu0 0.0
    %367 = vmatmul.mubr.f32.gmra.mxu0 %v222
    %v368 = vpop.f32.mrf.mxu0
    %v369 = vadd.f32 0.0, %v368
    %v370 = vpop.f32.mrf.mxu0
    %371 = vmatprep.mubr.f32.mxu0 0.0
    %372 = vmatmul.mubr.f32.gmra.mxu0 %v223
    %v373 = vpop.f32.mrf.mxu0
    %v374 = vadd.f32 0.0, %v373
    %v375 = vpop.f32.mrf.mxu0
    %376 = vmatprep.mubr.f32.mxu0 0.0
    %377 = vmatmul.mubr.f32.gmra.mxu0 %v224
    %v378 = vpop.f32.mrf.mxu0
    %v379 = vadd.f32 0.0, %v378
    %v380 = vpop.f32.mrf.mxu0
    %381 = vmatprep.mubr.f32.mxu0 0.0
    %382 = vmatmul.mubr.f32.gmra.mxu0 %v225
    %v383 = vpop.f32.mrf.mxu0
    %v384 = vadd.f32 0.0, %v383
    %v385 = vpop.f32.mrf.mxu0
    %386 = vdwg.mxu0
    %v387 = vld [vmem:[%s3] sm:$0xff]
    %v388 = vld [vmem:[%s3 + $0x8] sm:$0xff]
    %v389 = vld [vmem:[%s3 + $0x10] sm:$0xff]
    %v390 = vld [vmem:[%s3 + $0x18] sm:$0xff]
    %v391 = vld [vmem:[%s3 + $0x20] sm:$0xff]
    %v392 = vld [vmem:[%s3 + $0x28] sm:$0xff]
    %v393 = vld [vmem:[%s3 + $0x30] sm:$0xff]
    %v394 = vld [vmem:[%s3 + $0x38] sm:$0xff]
    %v395 = vld [vmem:[%s3 + $0x40] sm:$0xff]
    %v396 = vld [vmem:[%s3 + $0x48] sm:$0xff]
    %v397 = vld [vmem:[%s3 + $0x50] sm:$0xff]
    %v398 = vld [vmem:[%s3 + $0x58] sm:$0xff]
    %v399 = vld [vmem:[%s3 + $0x60] sm:$0xff]
    %v400 = vld [vmem:[%s3 + $0x68] sm:$0xff]
    %v401 = vld [vmem:[%s3 + $0x70] sm:$0xff]
    %v402 = vld [vmem:[%s3 + $0x78] sm:$0xff]
    %403 = vmatprep.subr.mxu0 0.0
    %404 = vmatpush1.msra.mxu0 %v402
    %405 = vmatprep.subr.mxu0 0.0
    %406 = vmatpush1.msra.mxu0 %v401
    %407 = vmatprep.subr.mxu0 0.0
    %408 = vmatpush1.msra.mxu0 %v400
    %409 = vmatprep.subr.mxu0 0.0
    %410 = vmatpush1.msra.mxu0 %v399
    %411 = vmatprep.subr.mxu0 0.0
    %412 = vmatpush1.msra.mxu0 %v398
    %413 = vmatprep.subr.mxu0 0.0
    %414 = vmatpush1.msra.mxu0 %v397
    %415 = vmatprep.subr.mxu0 0.0
    %416 = vmatpush1.msra.mxu0 %v396
    %417 = vmatprep.subr.mxu0 0.0
    %418 = vmatpush1.msra.mxu0 %v395
    %419 = vmatprep.subr.mxu0 0.0
    %420 = vmatpush1.msra.mxu0 %v394
    %421 = vmatprep.subr.mxu0 0.0
    %422 = vmatpush1.msra.mxu0 %v393
    %423 = vmatprep.subr.mxu0 0.0
    %424 = vmatpush1.msra.mxu0 %v392
    %425 = vmatprep.subr.mxu0 0.0
    %426 = vmatpush1.msra.mxu0 %v391
    %427 = vmatprep.subr.mxu0 0.0
    %428 = vmatpush1.msra.mxu0 %v390
    %429 = vmatprep.subr.mxu0 0.0
    %430 = vmatpush1.msra.mxu0 %v389
    %431 = vmatprep.subr.mxu0 0.0
    %432 = vmatpush1.msra.mxu0 %v388
    %433 = vmatprep.subr.mxu0 0.0
    %434 = vmatpush1.msra.mxu0 %v387
    %435 = vmatprep.subr.mxu0 0.0
    %436 = vmatpush2.msra.mxu0 0.0
    %437 = vmatprep.subr.mxu0 0.0
    %438 = vmatpush2.msra.mxu0 0.0
    %439 = vmatprep.subr.mxu0 0.0
    %440 = vmatpush2.msra.mxu0 0.0
    %441 = vmatprep.subr.mxu0 0.0
    %442 = vmatpush2.msra.mxu0 0.0
    %443 = vmatprep.subr.mxu0 0.0
    %444 = vmatpush2.msra.mxu0 0.0
    %445 = vmatprep.subr.mxu0 0.0
    %446 = vmatpush2.msra.mxu0 0.0
    %447 = vmatprep.subr.mxu0 0.0
    %448 = vmatpush2.msra.mxu0 0.0
    %449 = vmatprep.subr.mxu0 0.0
    %450 = vmatpush2.msra.mxu0 0.0
    %451 = vmatprep.subr.mxu0 0.0
    %452 = vmatpush2.msra.mxu0 0.0
    %453 = vmatprep.subr.mxu0 0.0
    %454 = vmatpush2.msra.mxu0 0.0
    %455 = vmatprep.subr.mxu0 0.0
    %456 = vmatpush2.msra.mxu0 0.0
    %457 = vmatprep.subr.mxu0 0.0
    %458 = vmatpush2.msra.mxu0 0.0
    %459 = vmatprep.subr.mxu0 0.0
    %460 = vmatpush2.msra.mxu0 0.0
    %461 = vmatprep.subr.mxu0 0.0
    %462 = vmatpush2.msra.mxu0 0.0
    %463 = vmatprep.subr.mxu0 0.0
    %464 = vmatpush2.msra.mxu0 0.0
    %465 = vmatprep.subr.mxu0 0.0
    %466 = vmatpush2.msra.mxu0 0.0
    %467 = vmatprep.mubr.f32.mxu0 0.0
    %468 = vmatmul.mubr.f32.gmra.mxu0 %v210
    %v469 = vpop.f32.mrf.mxu0
    %v470 = vadd.f32 0.0, %v469
    %v471 = vpop.f32.mrf.mxu0
    %472 = vmatprep.mubr.f32.mxu0 0.0
    %473 = vmatmul.mubr.f32.gmra.mxu0 %v211
    %v474 = vpop.f32.mrf.mxu0
    %v475 = vadd.f32 0.0, %v474
    %v476 = vpop.f32.mrf.mxu0
    %477 = vmatprep.mubr.f32.mxu0 0.0
    %478 = vmatmul.mubr.f32.gmra.mxu0 %v212
    %v479 = vpop.f32.mrf.mxu0
    %v480 = vadd.f32 0.0, %v479
    %v481 = vpop.f32.mrf.mxu0
    %482 = vmatprep.mubr.f32.mxu0 0.0
    %483 = vmatmul.mubr.f32.gmra.mxu0 %v213
    %v484 = vpop.f32.mrf.mxu0
    %v485 = vadd.f32 0.0, %v484
    %v486 = vpop.f32.mrf.mxu0
    %487 = vmatprep.mubr.f32.mxu0 0.0
    %488 = vmatmul.mubr.f32.gmra.mxu0 %v214
    %v489 = vpop.f32.mrf.mxu0
    %v490 = vadd.f32 0.0, %v489
    %v491 = vpop.f32.mrf.mxu0
    %492 = vmatprep.mubr.f32.mxu0 0.0
    %493 = vmatmul.mubr.f32.gmra.mxu0 %v215
    %v494 = vpop.f32.mrf.mxu0
    %v495 = vadd.f32 0.0, %v494
    %v496 = vpop.f32.mrf.mxu0
    %497 = vmatprep.mubr.f32.mxu0 0.0
    %498 = vmatmul.mubr.f32.gmra.mxu0 %v216
    %v499 = vpop.f32.mrf.mxu0
    %v500 = vadd.f32 0.0, %v499
    %v501 = vpop.f32.mrf.mxu0
    %502 = vmatprep.mubr.f32.mxu0 0.0
    %503 = vmatmul.mubr.f32.gmra.mxu0 %v217
    %v504 = vpop.f32.mrf.mxu0
    %v505 = vadd.f32 0.0, %v504
    %v506 = vpop.f32.mrf.mxu0
    %507 = vmatprep.mubr.f32.mxu0 0.0
    %508 = vmatmul.mubr.f32.gmra.mxu0 %v218
    %v509 = vpop.f32.mrf.mxu0
    %v510 = vadd.f32 0.0, %v509
    %v511 = vpop.f32.mrf.mxu0
    %512 = vmatprep.mubr.f32.mxu0 0.0
    %513 = vmatmul.mubr.f32.gmra.mxu0 %v219
    %v514 = vpop.f32.mrf.mxu0
    %v515 = vadd.f32 0.0, %v514
    %v516 = vpop.f32.mrf.mxu0
    %517 = vmatprep.mubr.f32.mxu0 0.0
    %518 = vmatmul.mubr.f32.gmra.mxu0 %v220
    %v519 = vpop.f32.mrf.mxu0
    %v520 = vadd.f32 0.0, %v519
    %v521 = vpop.f32.mrf.mxu0
    %522 = vmatprep.mubr.f32.mxu0 0.0
    %523 = vmatmul.mubr.f32.gmra.mxu0 %v221
    %v524 = vpop.f32.mrf.mxu0
    %v525 = vadd.f32 0.0, %v524
    %v526 = vpop.f32.mrf.mxu0
    %527 = vmatprep.mubr.f32.mxu0 0.0
    %528 = vmatmul.mubr.f32.gmra.mxu0 %v222
    %v529 = vpop.f32.mrf.mxu0
    %v530 = vadd.f32 0.0, %v529
    %v531 = vpop.f32.mrf.mxu0
    %532 = vmatprep.mubr.f32.mxu0 0.0
    %533 = vmatmul.mubr.f32.gmra.mxu0 %v223
    %v534 = vpop.f32.mrf.mxu0
    %v535 = vadd.f32 0.0, %v534
    %v536 = vpop.f32.mrf.mxu0
    %537 = vmatprep.mubr.f32.mxu0 0.0
    %538 = vmatmul.mubr.f32.gmra.mxu0 %v224
    %v539 = vpop.f32.mrf.mxu0
    %v540 = vadd.f32 0.0, %v539
    %v541 = vpop.f32.mrf.mxu0
    %542 = vmatprep.mubr.f32.mxu0 0.0
    %543 = vmatmul.mubr.f32.gmra.mxu0 %v225
    %v544 = vpop.f32.mrf.mxu0
    %v545 = vadd.f32 0.0, %v544
    %v546 = vpop.f32.mrf.mxu0
    %547 = vdwg.mxu0
    %v548 = vld [vmem:[#allocation2] sm:$0xff]
    %v549 = vld [vmem:[#allocation2 + $0x8] sm:$0xff]
    %v550 = vld [vmem:[#allocation2 + $0x10] sm:$0xff]
    %v551 = vld [vmem:[#allocation2 + $0x18] sm:$0xff]
    %v552 = vld [vmem:[#allocation2 + $0x20] sm:$0xff]
    %v553 = vld [vmem:[#allocation2 + $0x28] sm:$0xff]
    %v554 = vld [vmem:[#allocation2 + $0x30] sm:$0xff]
    %v555 = vld [vmem:[#allocation2 + $0x38] sm:$0xff]
    %v556 = vld [vmem:[#allocation2 + $0x40] sm:$0xff]
    %v557 = vld [vmem:[#allocation2 + $0x48] sm:$0xff]
    %v558 = vld [vmem:[#allocation2 + $0x50] sm:$0xff]
    %v559 = vld [vmem:[#allocation2 + $0x58] sm:$0xff]
    %v560 = vld [vmem:[#allocation2 + $0x60] sm:$0xff]
    %v561 = vld [vmem:[#allocation2 + $0x68] sm:$0xff]
    %v562 = vld [vmem:[#allocation2 + $0x70] sm:$0xff]
    %v563 = vld [vmem:[#allocation2 + $0x78] sm:$0xff]
    %565 = vset.pattern.permute.xlu0 0
    %566 = vperm.xlu0 %565, %v309
    %v567 = vpop.permute.xlu0 %566
    %570 = vset.pattern.permute.xlu0 0
    %571 = vperm.xlu0 %570, %v314
    %v572 = vpop.permute.xlu0 %571
    %575 = vset.pattern.permute.xlu0 0
    %576 = vperm.xlu0 %575, %v319
    %v577 = vpop.permute.xlu0 %576
    %580 = vset.pattern.permute.xlu0 0
    %581 = vperm.xlu0 %580, %v324
    %v582 = vpop.permute.xlu0 %581
    %585 = vset.pattern.permute.xlu0 0
    %586 = vperm.xlu0 %585, %v329
    %v587 = vpop.permute.xlu0 %586
    %590 = vset.pattern.permute.xlu0 0
    %591 = vperm.xlu0 %590, %v334
    %v592 = vpop.permute.xlu0 %591
    %595 = vset.pattern.permute.xlu0 0
    %596 = vperm.xlu0 %595, %v339
    %v597 = vpop.permute.xlu0 %596
    %600 = vset.pattern.permute.xlu0 0
    %601 = vperm.xlu0 %600, %v344
    %v602 = vpop.permute.xlu0 %601
    %605 = vset.pattern.permute.xlu0 0
    %606 = vperm.xlu0 %605, %v349
    %v607 = vpop.permute.xlu0 %606
    %610 = vset.pattern.permute.xlu0 0
    %611 = vperm.xlu0 %610, %v354
    %v612 = vpop.permute.xlu0 %611
    %615 = vset.pattern.permute.xlu0 0
    %616 = vperm.xlu0 %615, %v359
    %v617 = vpop.permute.xlu0 %616
    %620 = vset.pattern.permute.xlu0 0
    %621 = vperm.xlu0 %620, %v364
    %v622 = vpop.permute.xlu0 %621
    %625 = vset.pattern.permute.xlu0 0
    %626 = vperm.xlu0 %625, %v369
    %v627 = vpop.permute.xlu0 %626
    %630 = vset.pattern.permute.xlu0 0
    %631 = vperm.xlu0 %630, %v374
    %v632 = vpop.permute.xlu0 %631
    %635 = vset.pattern.permute.xlu0 0
    %636 = vperm.xlu0 %635, %v379
    %v637 = vpop.permute.xlu0 %636
    %640 = vset.pattern.permute.xlu0 0
    %641 = vperm.xlu0 %640, %v384
    %v642 = vpop.permute.xlu0 %641
    %v644 = vmul.f32 %v567, %v548
    %v645 = vmul.f32 %v572, %v549
    %v646 = vmul.f32 %v577, %v550
    %v647 = vmul.f32 %v582, %v551
    %v648 = vmul.f32 %v587, %v552
    %v649 = vmul.f32 %v592, %v553
    %v650 = vmul.f32 %v597, %v554
    %v651 = vmul.f32 %v602, %v555
    %v652 = vmul.f32 %v607, %v556
    %v653 = vmul.f32 %v612, %v557
    %v654 = vmul.f32 %v617, %v558
    %v655 = vmul.f32 %v622, %v559
    %v656 = vmul.f32 %v627, %v560
    %v657 = vmul.f32 %v632, %v561
    %v658 = vmul.f32 %v637, %v562
    %v659 = vmul.f32 %v642, %v563
    %v660 = vadd.f32 %v644, %v470
    %v661 = vadd.f32 %v645, %v475
    %v662 = vadd.f32 %v646, %v480
    %v663 = vadd.f32 %v647, %v485
    %v664 = vadd.f32 %v648, %v490
    %v665 = vadd.f32 %v649, %v495
    %v666 = vadd.f32 %v650, %v500
    %v667 = vadd.f32 %v651, %v505
    %v668 = vadd.f32 %v652, %v510
    %v669 = vadd.f32 %v653, %v515
    %v670 = vadd.f32 %v654, %v520
    %v671 = vadd.f32 %v655, %v525
    %v672 = vadd.f32 %v656, %v530
    %v673 = vadd.f32 %v657, %v535
    %v674 = vadd.f32 %v658, %v540
    %v675 = vadd.f32 %v659, %v545
    %676 = vst [vmem:[%s4] sm:$0xff] %v660
    %677 = vst [vmem:[%s4 + $0x8] sm:$0xff] %v661
    %678 = vst [vmem:[%s4 + $0x10] sm:$0xff] %v662
    %679 = vst [vmem:[%s4 + $0x18] sm:$0xff] %v663
    %680 = vst [vmem:[%s4 + $0x20] sm:$0xff] %v664
    %681 = vst [vmem:[%s4 + $0x28] sm:$0xff] %v665
    %682 = vst [vmem:[%s4 + $0x30] sm:$0xff] %v666
    %683 = vst [vmem:[%s4 + $0x38] sm:$0xff] %v667
    %684 = vst [vmem:[%s4 + $0x40] sm:$0xff] %v668
    %685 = vst [vmem:[%s4 + $0x48] sm:$0xff] %v669
    %686 = vst [vmem:[%s4 + $0x50] sm:$0xff] %v670
    %687 = vst [vmem:[%s4 + $0x58] sm:$0xff] %v671
    %688 = vst [vmem:[%s4 + $0x60] sm:$0xff] %v672
    %689 = vst [vmem:[%s4 + $0x68] sm:$0xff] %v673
    %690 = vst [vmem:[%s4 + $0x70] sm:$0xff] %v674
    %691 = vst [vmem:[%s4 + $0x78] sm:$0xff] %v675
    // Predicated region
    $region56: #{jj_norm_pallas.3} parent=1 // pred_check
      _
    $region57: #{jj_norm_pallas.3} parent=1 // pred_check_branch
      %693 = sbr.rel (0) target = $region59
    $region58: #{jj_norm_pallas.3} parent=1 // pred_region
      _
    $region59: #{jj_norm_pallas.3} parent=1 // pred_fallthru
      _
    // Predicated region
    $region60: #{jj_norm_pallas.3} parent=1 // pred_check
      _
    $region61: #{jj_norm_pallas.3} parent=1 // pred_check_branch
      %695 = sbr.rel (0) target = $region63
    $region62: #{jj_norm_pallas.3} parent=1 // pred_region
      _
    $region63: #{jj_norm_pallas.3} parent=1 // pred_fallthru
      _

</llo_original>
